<compile_context>
chip_gen: v7x
topology: tpu7x:2x2x1
jax: 0.10.0
libtpu: 0.0.40
codegen_flags: <defaults>
</compile_context>

<pallas_src>
import functools

import jax
import jax.numpy as jnp
from jax import lax
from jax.experimental import pallas as pl
from jax.experimental.pallas import tpu as pltpu

EPS = 1e-5  # matches torch.nn.LayerNorm default


def _layernorm(x, gamma, beta):
    mean = jnp.mean(x, axis=-1, keepdims=True)
    var = jnp.mean(jnp.square(x - mean), axis=-1, keepdims=True)
    return (x - mean) * lax.rsqrt(var + EPS) * gamma + beta


# ----------------------------- kernels ------------------------------------


def patch_embed_kernel(x_ref, g1_ref, b1_ref, w_ref, b_ref, g2_ref, b2_ref, o_ref):
    # x_ref: (1, N, patch_dim) f32, w_ref: bf16; o_ref: (1, N, dim) f32
    x = x_ref[0]
    xn = _layernorm(x, g1_ref[...], b1_ref[...])
    y = jnp.dot(xn.astype(jnp.bfloat16), w_ref[...],
                preferred_element_type=jnp.float32) + b_ref[...]
    o_ref[0] = _layernorm(y, g2_ref[...], b2_ref[...])


def layer_kernel(x_ref, c_ref,
                 ag_ref, ab_ref, wq_ref, wk_ref, wv_ref, wo_ref, bo_ref,
                 fg_ref, fb_ref, w1_ref, b1_ref, w2_ref, b2_ref,
                 o_ref, *, heads, dim_head, scale):
    # Fused transformer layer:  x = attn(LN(x), LN(ctx)) + x ; x = ff(LN(x)) + x
    x = x_ref[0]          # (N, D) f32 queries
    c = c_ref[0]          # (M, D) f32 context (unmasked tokens)

    # ---------------- cross attention ----------------
    xn = _layernorm(x, ag_ref[...], ab_ref[...]).astype(jnp.bfloat16)
    cn = _layernorm(c, ag_ref[...], ab_ref[...]).astype(jnp.bfloat16)

    q = jnp.dot(xn, wq_ref[...], preferred_element_type=jnp.float32) * scale
    k = jnp.dot(cn, wk_ref[...], preferred_element_type=jnp.float32)
    v = jnp.dot(cn, wv_ref[...], preferred_element_type=jnp.float32)

    qb = q.astype(jnp.bfloat16)
    kb = k.astype(jnp.bfloat16)
    vb = v.astype(jnp.bfloat16)

    # concat_h(attn_h @ v_h) @ wo  ==  sum_h (attn_h @ v_h) @ wo[h-block]
    # -> no lane-axis concatenate needed; accumulate directly in f32.
    attn_out = jnp.zeros(x.shape, jnp.float32)
    for h in range(heads):  # tiny static unroll over heads
        sl = slice(h * dim_head, (h + 1) * dim_head)
        dots = lax.dot_general(qb[:, sl], kb[:, sl], (((1,), (1,)), ((), ())),
                               preferred_element_type=jnp.float32)
        dots = dots - jnp.max(dots, axis=-1, keepdims=True)
        e = jnp.exp(dots)
        inv = pl.reciprocal(jnp.sum(e, axis=-1, keepdims=True), approx=True)
        attn = (e * inv).astype(jnp.bfloat16)
        oh = jnp.dot(attn, vb[:, sl], preferred_element_type=jnp.float32)
        attn_out = attn_out + jnp.dot(oh.astype(jnp.bfloat16), wo_ref[sl, :],
                                      preferred_element_type=jnp.float32)

    x = attn_out + bo_ref[...] + x   # residual

    # ---------------- feed forward ----------------
    hn = _layernorm(x, fg_ref[...], fb_ref[...]).astype(jnp.bfloat16)
    hm = jnp.dot(hn, w1_ref[...], preferred_element_type=jnp.float32) + b1_ref[...]
    hm = jax.nn.gelu(hm, approximate=False)   # exact erf GELU like torch.nn.GELU()
    ff = jnp.dot(hm.astype(jnp.bfloat16), w2_ref[...],
                 preferred_element_type=jnp.float32) + b2_ref[...]
    o_ref[0] = ff + x   # residual


def head_loss_kernel(x_ref, g_ref, bt_ref, w_ref, b_ref, o_ref, *, batch, num_patches):
    # Per-batch grid step; o_ref is a resident (1,1) accumulator across the grid.
    bi = pl.program_id(0)

    @pl.when(bi == 0)
    def _():
        o_ref[...] = jnp.zeros_like(o_ref)

    x = x_ref[0]                                   # (N, D)
    xn = _layernorm(x, g_ref[...], bt_ref[...])
    logits = jnp.dot(xn.astype(jnp.bfloat16), w_ref[...],
                     preferred_element_type=jnp.float32) + b_ref[...]
    m = jnp.max(logits, axis=-1, keepdims=True)
    lse = jnp.log(jnp.sum(jnp.exp(logits - m), axis=-1, keepdims=True)) + m
    rows = lax.broadcasted_iota(jnp.int32, logits.shape, 0)
    cols = lax.broadcasted_iota(jnp.int32, logits.shape, 1)
    # label of row n is n  (logits is (N, num_patches) with N == num_patches)
    label_logit = jnp.sum(jnp.where(rows == cols, logits, 0.0),
                          axis=-1, keepdims=True)
    o_ref[...] = o_ref[...] + jnp.sum(lse - label_logit)

    @pl.when(bi == batch - 1)
    def _():
        o_ref[...] = o_ref[...] * (1.0 / float(batch * num_patches))


# ----------------------------- wrappers ------------------------------------


def patch_embed(tokens, p):
    B, N, Pd = tokens.shape
    D = p["pe_w"].shape[1]
    return pl.pallas_call(
        patch_embed_kernel,
        out_shape=jax.ShapeDtypeStruct((B, N, D), jnp.float32),
        grid=(B,),
        in_specs=[
            pl.BlockSpec((1, N, Pd), lambda b: (b, 0, 0)),
            pl.BlockSpec((1, Pd), lambda b: (0, 0)),
            pl.BlockSpec((1, Pd), lambda b: (0, 0)),
            pl.BlockSpec((Pd, D), lambda b: (0, 0)),
            pl.BlockSpec((1, D), lambda b: (0, 0)),
            pl.BlockSpec((1, D), lambda b: (0, 0)),
            pl.BlockSpec((1, D), lambda b: (0, 0)),
        ],
        out_specs=pl.BlockSpec((1, N, D), lambda b: (b, 0, 0)),
        compiler_params=pltpu.CompilerParams(dimension_semantics=("parallel",)),
    )(tokens, p["pe_g1"], p["pe_b1"], p["pe_w"].astype(jnp.bfloat16),
      p["pe_b"], p["pe_g2"], p["pe_b2"])


def transformer_layer(x, ctx, lp, *, heads, dim_head):
    B, N, D = x.shape
    M = ctx.shape[1]
    inner = heads * dim_head
    Dh = lp["w1"].shape[1]
    bf16 = jnp.bfloat16
    kernel = functools.partial(layer_kernel, heads=heads, dim_head=dim_head,
                               scale=dim_head ** -0.5)
    return pl.pallas_call(
        kernel,
        out_shape=jax.ShapeDtypeStruct((B, N, D), jnp.float32),
        grid=(B,),
        in_specs=[
            pl.BlockSpec((1, N, D), lambda b: (b, 0, 0)),       # x
            pl.BlockSpec((1, M, D), lambda b: (b, 0, 0)),       # context
            pl.BlockSpec((1, D), lambda b: (0, 0)),             # attn LN gamma
            pl.BlockSpec((1, D), lambda b: (0, 0)),             # attn LN beta
            pl.BlockSpec((D, inner), lambda b: (0, 0)),         # wq (bf16)
            pl.BlockSpec((D, inner), lambda b: (0, 0)),         # wk (bf16)
            pl.BlockSpec((D, inner), lambda b: (0, 0)),         # wv (bf16)
            pl.BlockSpec((inner, D), lambda b: (0, 0)),         # wo (bf16)
            pl.BlockSpec((1, D), lambda b: (0, 0)),             # bo
            pl.BlockSpec((1, D), lambda b: (0, 0)),             # ff LN gamma
            pl.BlockSpec((1, D), lambda b: (0, 0)),             # ff LN beta
            pl.BlockSpec((D, Dh), lambda b: (0, 0)),            # w1 (bf16)
            pl.BlockSpec((1, Dh), lambda b: (0, 0)),            # b1
            pl.BlockSpec((Dh, D), lambda b: (0, 0)),            # w2 (bf16)
            pl.BlockSpec((1, D), lambda b: (0, 0)),             # b2
        ],
        out_specs=pl.BlockSpec((1, N, D), lambda b: (b, 0, 0)),
        compiler_params=pltpu.CompilerParams(dimension_semantics=("parallel",)),
    )(x, ctx,
      lp["attn_g"], lp["attn_b"],
      lp["wq"].astype(bf16), lp["wk"].astype(bf16), lp["wv"].astype(bf16),
      lp["wo"].astype(bf16), lp["bo"],
      lp["ff_g"], lp["ff_b"],
      lp["w1"].astype(bf16), lp["b1"], lp["w2"].astype(bf16), lp["b2"])


def head_loss(x, p):
    B, N, D = x.shape
    P = p["head_w"].shape[1]
    kernel = functools.partial(head_loss_kernel, batch=B, num_patches=N)
    loss = pl.pallas_call(
        kernel,
        out_shape=jax.ShapeDtypeStruct((1, 1), jnp.float32),
        grid=(B,),
        in_specs=[
            pl.BlockSpec((1, N, D), lambda b: (b, 0, 0)),
            pl.BlockSpec((1, D), lambda b: (0, 0)),
            pl.BlockSpec((1, D), lambda b: (0, 0)),
            pl.BlockSpec((D, P), lambda b: (0, 0)),
            pl.BlockSpec((1, P), lambda b: (0, 0)),
        ],
        out_specs=pl.BlockSpec((1, 1), lambda b: (0, 0)),
        compiler_params=pltpu.CompilerParams(dimension_semantics=("arbitrary",)),
    )(x, p["head_g"], p["head_b"], p["head_w"].astype(jnp.bfloat16), p["head_bias"])
    return loss[0, 0]


# --------------------------- params & forward -------------------------------


def init_params(key, *, channels, patch_size, dim, depth, heads, dim_head,
                mlp_dim, num_patches):
    patch_dim = channels * patch_size * patch_size
    inner = heads * dim_head
    keys = list(jax.random.split(key, 2 + depth * 6))
    ki = iter(keys)

    def lin(k, fan_in, fan_out):
        return (jax.random.normal(k, (fan_in, fan_out), jnp.float32)
                * (fan_in ** -0.5))

    params = {
        "pe_g1": jnp.ones((1, patch_dim), jnp.float32),
        "pe_b1": jnp.zeros((1, patch_dim), jnp.float32),
        "pe_w": lin(next(ki), patch_dim, dim),
        "pe_b": jnp.zeros((1, dim), jnp.float32),
        "pe_g2": jnp.ones((1, dim), jnp.float32),
        "pe_b2": jnp.zeros((1, dim), jnp.float32),
        "head_g": jnp.ones((1, dim), jnp.float32),
        "head_b": jnp.zeros((1, dim), jnp.float32),
        "head_w": lin(next(ki), dim, num_patches),
        "head_bias": jnp.zeros((1, num_patches), jnp.float32),
        "layers": [],
    }
    for _ in range(depth):
        params["layers"].append(dict(
            attn_g=jnp.ones((1, dim), jnp.float32),
            attn_b=jnp.zeros((1, dim), jnp.float32),
            wq=lin(next(ki), dim, inner),
            wk=lin(next(ki), dim, inner),
            wv=lin(next(ki), dim, inner),
            wo=lin(next(ki), inner, dim),
            bo=jnp.zeros((1, dim), jnp.float32),
            ff_g=jnp.ones((1, dim), jnp.float32),
            ff_b=jnp.zeros((1, dim), jnp.float32),
            w1=lin(next(ki), dim, mlp_dim),
            b1=jnp.zeros((1, mlp_dim), jnp.float32),
            w2=lin(next(ki), mlp_dim, dim),
            b2=jnp.zeros((1, dim), jnp.float32),
        ))
    return params


def mp3_forward(img, params, *, patch_size, heads, dim_head, masking_ratio, mask_key):
    B, C, H, W = img.shape
    p = patch_size
    h, w = H // p, W // p
    N = h * w
    # glue: 'b c (h p1) (w p2) -> b (h w) (p1 p2 c)'
    x = img.reshape(B, C, h, p, w, p)
    x = jnp.transpose(x, (0, 2, 4, 3, 5, 1))
    tokens_raw = x.reshape(B, N, p * p * C)

    tokens = patch_embed(tokens_raw, params)

    # glue: deterministic random masking (torch.rand(...).argsort equivalent);
    # the gather is done once here and the gathered context is reused by every layer.
    num_masked = int(masking_ratio * N)
    rand = jax.random.uniform(mask_key, (B, N))
    rand_indices = jnp.argsort(rand, axis=-1)
    unmasked_indices = rand_indices[:, num_masked:]
    tokens_unmasked = jnp.take_along_axis(tokens, unmasked_indices[:, :, None], axis=1)

    xcur = tokens
    for lp in params["layers"]:
        xcur = transformer_layer(xcur, tokens_unmasked, lp,
                                 heads=heads, dim_head=dim_head)

    return head_loss(xcur, params)


if __name__ == "__main__":
    B, C, H, W = 2, 4, 16, 16
    patch_size = 4
    dim = 32
    depth = 2
    heads = 2
    dim_head = 16
    mlp_dim = 64
    masking_ratio = 0.5
    num_patches = (H // patch_size) * (W // patch_size)

    key = jax.random.PRNGKey(0)
    k_img, k_param, k_mask = jax.random.split(key, 3)
    img = jax.random.normal(k_img, (B, C, H, W), jnp.float32)
    params = init_params(k_param, channels=C, patch_size=patch_size, dim=dim,
                         depth=depth, heads=heads, dim_head=dim_head,
                         mlp_dim=mlp_dim, num_patches=num_patches)

    loss = mp3_forward(img, params, patch_size=patch_size, heads=heads,
                       dim_head=dim_head, masking_ratio=masking_ratio,
                       mask_key=k_mask)
    jax.block_until_ready(loss)
    print("KERNEL_OK")
</pallas_src>

<mosaic_0001>
module attributes {stable_mosaic.version = 11 : i64} {
  func.func @patch_embed_kernel(%arg0: i32, %arg1: memref<1x16x64xf32, #tpu.memory_space<vmem>>, %arg2: memref<1x64xf32, #tpu.memory_space<vmem>>, %arg3: memref<1x64xf32, #tpu.memory_space<vmem>>, %arg4: memref<64x32xbf16, #tpu.memory_space<vmem>>, %arg5: memref<1x32xf32, #tpu.memory_space<vmem>>, %arg6: memref<1x32xf32, #tpu.memory_space<vmem>>, %arg7: memref<1x32xf32, #tpu.memory_space<vmem>>, %arg8: memref<1x16x32xf32, #tpu.memory_space<vmem>>) attributes {dimension_semantics = [#tpu.dimension_semantics<parallel>], iteration_bounds = array<i64: 2>, scalar_prefetch = 0 : i64, scratch_operands = 0 : i64, tpu.core_type = #tpu.core_type<tc>, window_params = [{transform_indices = @transform_0, window_bounds = array<i64: 1, 16, 64>}, {pipeline_mode = #tpu.pipeline_mode<synchronous>, transform_indices = @transform_1, window_bounds = array<i64: 1, 64>}, {pipeline_mode = #tpu.pipeline_mode<synchronous>, transform_indices = @transform_2, window_bounds = array<i64: 1, 64>}, {pipeline_mode = #tpu.pipeline_mode<synchronous>, transform_indices = @transform_3, window_bounds = array<i64: 64, 32>}, {pipeline_mode = #tpu.pipeline_mode<synchronous>, transform_indices = @transform_4, window_bounds = array<i64: 1, 32>}, {pipeline_mode = #tpu.pipeline_mode<synchronous>, transform_indices = @transform_5, window_bounds = array<i64: 1, 32>}, {pipeline_mode = #tpu.pipeline_mode<synchronous>, transform_indices = @transform_6, window_bounds = array<i64: 1, 32>}, {transform_indices = @transform_7, window_bounds = array<i64: 1, 16, 32>}]} {
    %c0 = arith.constant 0 : index
    %c0_0 = arith.constant 0 : index
    %c0_1 = arith.constant 0 : index
    %0 = vector.load %arg1[%c0, %c0_0, %c0_1] : memref<1x16x64xf32, #tpu.memory_space<vmem>>, vector<1x16x64xf32>
    %1 = vector.shape_cast %0 : vector<1x16x64xf32> to vector<16x64xf32>
    %c0_2 = arith.constant 0 : index
    %c0_3 = arith.constant 0 : index
    %2 = vector.load %arg2[%c0_2, %c0_3] : memref<1x64xf32, #tpu.memory_space<vmem>>, vector<1x64xf32>
    %c0_4 = arith.constant 0 : index
    %c0_5 = arith.constant 0 : index
    %3 = vector.load %arg3[%c0_4, %c0_5] : memref<1x64xf32, #tpu.memory_space<vmem>>, vector<1x64xf32>
    %cst = arith.constant dense<0.000000e+00> : vector<16xf32>
    %4 = vector.multi_reduction <add>, %1, %cst [1] : vector<16x64xf32> to vector<16xf32>
    %5 = vector.shape_cast %4 : vector<16xf32> to vector<16x1xf32>
    %cst_6 = arith.constant 6.400000e+01 : f32
    %6 = vector.broadcast %cst_6 : f32 to vector<16x1xf32>
    %7 = arith.divf %5, %6 : vector<16x1xf32>
    %8 = vector.broadcast %7 : vector<16x1xf32> to vector<16x64xf32>
    %9 = arith.subf %1, %8 : vector<16x64xf32>
    %10 = arith.mulf %9, %9 : vector<16x64xf32>
    %cst_7 = arith.constant dense<0.000000e+00> : vector<16xf32>
    %11 = vector.multi_reduction <add>, %10, %cst_7 [1] : vector<16x64xf32> to vector<16xf32>
    %12 = vector.shape_cast %11 : vector<16xf32> to vector<16x1xf32>
    %cst_8 = arith.constant 6.400000e+01 : f32
    %13 = vector.broadcast %cst_8 : f32 to vector<16x1xf32>
    %14 = arith.divf %12, %13 : vector<16x1xf32>
    %15 = vector.broadcast %7 : vector<16x1xf32> to vector<16x64xf32>
    %16 = arith.subf %1, %15 : vector<16x64xf32>
    %cst_9 = arith.constant 9.99999974E-6 : f32
    %17 = vector.broadcast %cst_9 : f32 to vector<16x1xf32>
    %18 = arith.addf %14, %17 : vector<16x1xf32>
    %19 = math.rsqrt %18 : vector<16x1xf32>
    %20 = vector.broadcast %19 : vector<16x1xf32> to vector<16x64xf32>
    %21 = arith.mulf %16, %20 : vector<16x64xf32>
    %22 = vector.broadcast %2 : vector<1x64xf32> to vector<16x64xf32>
    %23 = arith.mulf %21, %22 : vector<16x64xf32>
    %24 = vector.broadcast %3 : vector<1x64xf32> to vector<16x64xf32>
    %25 = arith.addf %23, %24 : vector<16x64xf32>
    %26 = arith.truncf %25 : vector<16x64xf32> to vector<16x64xbf16>
    %c0_10 = arith.constant 0 : index
    %c0_11 = arith.constant 0 : index
    %27 = vector.load %arg4[%c0_10, %c0_11] : memref<64x32xbf16, #tpu.memory_space<vmem>>, vector<64x32xbf16>
    %cst_12 = arith.constant dense<0.000000e+00> : vector<16x32xf32>
    %28 = tpu.matmul %26, %27, %cst_12 {dimension_numbers = #tpu.dot_dimension_numbers<[1], [0], [0], [1], [0, 0, 1, 1], [], []>} : vector<16x64xbf16>, vector<64x32xbf16>, vector<16x32xf32> -> vector<16x32xf32>
    %c0_13 = arith.constant 0 : index
    %c0_14 = arith.constant 0 : index
    %29 = vector.load %arg5[%c0_13, %c0_14] : memref<1x32xf32, #tpu.memory_space<vmem>>, vector<1x32xf32>
    %30 = vector.broadcast %29 : vector<1x32xf32> to vector<16x32xf32>
    %31 = arith.addf %28, %30 : vector<16x32xf32>
    %c0_15 = arith.constant 0 : index
    %c0_16 = arith.constant 0 : index
    %32 = vector.load %arg6[%c0_15, %c0_16] : memref<1x32xf32, #tpu.memory_space<vmem>>, vector<1x32xf32>
    %c0_17 = arith.constant 0 : index
    %c0_18 = arith.constant 0 : index
    %33 = vector.load %arg7[%c0_17, %c0_18] : memref<1x32xf32, #tpu.memory_space<vmem>>, vector<1x32xf32>
    %cst_19 = arith.constant dense<0.000000e+00> : vector<16xf32>
    %34 = vector.multi_reduction <add>, %31, %cst_19 [1] : vector<16x32xf32> to vector<16xf32>
    %35 = vector.shape_cast %34 : vector<16xf32> to vector<16x1xf32>
    %cst_20 = arith.constant 3.200000e+01 : f32
    %36 = vector.broadcast %cst_20 : f32 to vector<16x1xf32>
    %37 = arith.divf %35, %36 : vector<16x1xf32>
    %38 = vector.broadcast %37 : vector<16x1xf32> to vector<16x32xf32>
    %39 = arith.subf %31, %38 : vector<16x32xf32>
    %40 = arith.mulf %39, %39 : vector<16x32xf32>
    %cst_21 = arith.constant dense<0.000000e+00> : vector<16xf32>
    %41 = vector.multi_reduction <add>, %40, %cst_21 [1] : vector<16x32xf32> to vector<16xf32>
    %42 = vector.shape_cast %41 : vector<16xf32> to vector<16x1xf32>
    %cst_22 = arith.constant 3.200000e+01 : f32
    %43 = vector.broadcast %cst_22 : f32 to vector<16x1xf32>
    %44 = arith.divf %42, %43 : vector<16x1xf32>
    %45 = vector.broadcast %37 : vector<16x1xf32> to vector<16x32xf32>
    %46 = arith.subf %31, %45 : vector<16x32xf32>
    %cst_23 = arith.constant 9.99999974E-6 : f32
    %47 = vector.broadcast %cst_23 : f32 to vector<16x1xf32>
    %48 = arith.addf %44, %47 : vector<16x1xf32>
    %49 = math.rsqrt %48 : vector<16x1xf32>
    %50 = vector.broadcast %49 : vector<16x1xf32> to vector<16x32xf32>
    %51 = arith.mulf %46, %50 : vector<16x32xf32>
    %52 = vector.broadcast %32 : vector<1x32xf32> to vector<16x32xf32>
    %53 = arith.mulf %51, %52 : vector<16x32xf32>
    %54 = vector.broadcast %33 : vector<1x32xf32> to vector<16x32xf32>
    %55 = arith.addf %53, %54 : vector<16x32xf32>
    %c0_24 = arith.constant 0 : index
    %c0_25 = arith.constant 0 : index
    %c0_26 = arith.constant 0 : index
    %56 = vector.load %arg8[%c0_24, %c0_25, %c0_26] : memref<1x16x32xf32, #tpu.memory_space<vmem>>, vector<1x16x32xf32>
    %57 = vector.shape_cast %56 : vector<1x16x32xf32> to vector<16x32xf32>
    %58 = vector.shape_cast %55 : vector<16x32xf32> to vector<1x16x32xf32>
    tpu.vector_store %arg8[%c0_24, %c0_25, %c0_26], %58 {strides = array<i32>} : memref<1x16x32xf32, #tpu.memory_space<vmem>>, vector<1x16x32xf32>,
    return
  }
  func.func @transform_0(%arg0: i32) -> (i32, i32, i32) {
    %c0_i32 = arith.constant 0 : i32
    %c0_i32_0 = arith.constant 0 : i32
    %c0_i32_1 = arith.constant 0 : i32
    return %arg0, %c0_i32, %c0_i32_0 : i32, i32, i32
  }
  func.func @transform_1(%arg0: i32) -> (i32, i32) {
    %c0_i32 = arith.constant 0 : i32
    %c0_i32_0 = arith.constant 0 : i32
    %c0_i32_1 = arith.constant 0 : i32
    return %c0_i32, %c0_i32_0 : i32, i32
  }
  func.func @transform_2(%arg0: i32) -> (i32, i32) {
    %c0_i32 = arith.constant 0 : i32
    %c0_i32_0 = arith.constant 0 : i32
    %c0_i32_1 = arith.constant 0 : i32
    return %c0_i32, %c0_i32_0 : i32, i32
  }
  func.func @transform_3(%arg0: i32) -> (i32, i32) {
    %c0_i32 = arith.constant 0 : i32
    %c0_i32_0 = arith.constant 0 : i32
    %c0_i32_1 = arith.constant 0 : i32
    return %c0_i32, %c0_i32_0 : i32, i32
  }
  func.func @transform_4(%arg0: i32) -> (i32, i32) {
    %c0_i32 = arith.constant 0 : i32
    %c0_i32_0 = arith.constant 0 : i32
    %c0_i32_1 = arith.constant 0 : i32
    return %c0_i32, %c0_i32_0 : i32, i32
  }
  func.func @transform_5(%arg0: i32) -> (i32, i32) {
    %c0_i32 = arith.constant 0 : i32
    %c0_i32_0 = arith.constant 0 : i32
    %c0_i32_1 = arith.constant 0 : i32
    return %c0_i32, %c0_i32_0 : i32, i32
  }
  func.func @transform_6(%arg0: i32) -> (i32, i32) {
    %c0_i32 = arith.constant 0 : i32
    %c0_i32_0 = arith.constant 0 : i32
    %c0_i32_1 = arith.constant 0 : i32
    return %c0_i32, %c0_i32_0 : i32, i32
  }
  func.func @transform_7(%arg0: i32) -> (i32, i32, i32) {
    %c0_i32 = arith.constant 0 : i32
    %c0_i32_0 = arith.constant 0 : i32
    %c0_i32_1 = arith.constant 0 : i32
    return %arg0, %c0_i32, %c0_i32_0 : i32, i32, i32
  }
}

</mosaic_0001>

<llo_original>
// kernel: tpu_custom_call.1
$region0: #{tpu_custom_call.1}
  #allocation0 [shape = 'u32[]', space=smem, size = 0x4, offset = 0x4, fixed_abs, tag = 'smem constant byte address 0x4 - core index']
  #allocation1 [shape = 'u32[144,128]{1,0:T(1,128)}', space=vmem, size = 0x12000, scoped, tag = 'internal scratch']
  %s0 = inlined_call_operand.vmem [shape: f32[2,16,64], index: 0, kind: input, shape index: {}]
  %s1 = inlined_call_operand.vmem [shape: f32[1,64], index: 1, kind: input, shape index: {}]
  %s2 = inlined_call_operand.vmem [shape: f32[1,64], index: 2, kind: input, shape index: {}]
  %s3 = inlined_call_operand.vmem [shape: bf16[64,32], index: 3, kind: input, shape index: {}]
  %s4 = inlined_call_operand.vmem [shape: f32[1,32], index: 4, kind: input, shape index: {}]
  %s5 = inlined_call_operand.vmem [shape: f32[1,32], index: 5, kind: input, shape index: {}]
  %s6 = inlined_call_operand.vmem [shape: f32[1,32], index: 6, kind: input, shape index: {}]
  %s7 = inlined_call_operand.hbm [shape: f32[2,16,32], index: 7, kind: output, shape index: {}]
  %s8 = sld [smem:[#allocation0]]
  $region61: #{tpu_custom_call.1} parent=0
    _
  %s10 = ssub.s32 1, %s8
  %s11 = scalar_select 0, %s10, %s8
  $region1: #{tpu_custom_call.1} parent=0
    #allocation2 [shape = 'u8[16384]{0}', space=vmem, size = 0x4000, scoped, tag = 'output window, operand 0']
    #allocation3 [shape = 's32[2]{0}', space=sflag, size = 0x8, scoped, tag = 'scoped memory for tpu_custom_call.1']
    %12 = vsyncpa [#allocation3], 0
    %s13 = scalar_lea.sflag [#allocation3], 1
    %14 = vsyncpa %s13, 0
    loop: start=0, step=1, limit=4
    $region2: #{tpu_custom_call.1} parent=1 // loop_pre_header
      _
    $region3: #{tpu_custom_call.1} parent=1 // loop_header
      %s16 = sphi 0, %s20
      %p17 = scmp.ge.s32.totalorder %s16, 4
      %s26 = sphi 0, %s28
      %s29 = sphi 0, %s26
      %s30 = sphi 0, %s29
      %s46 = sphi 0, %s30
      %s50 = sphi 0, %s50
      %s52 = sphi 0, %s50
      %s53 = sphi 0, %s52
      %s67 = sphi 0, %s53
      %s71 = sphi 0, %s71
      %s73 = sphi 0, %s71
      %s74 = sphi 0, %s73
      %s88 = sphi 0, %s74
      %s92 = sphi 0, %s92
      %s94 = sphi 0, %s92
      %s95 = sphi 0, %s94
      %s109 = sphi 0, %s95
      %s113 = sphi 0, %s113
      %s115 = sphi 0, %s113
      %s116 = sphi 0, %s115
      %s130 = sphi 0, %s116
      %s134 = sphi 0, %s134
      %s136 = sphi 0, %s134
      %s137 = sphi 0, %s136
      %s151 = sphi 0, %s137
      %s155 = sphi 0, %s155
      %s157 = sphi 0, %s155
      %s158 = sphi 0, %s157
      %s172 = sphi 0, %s158
      %s178 = sphi 0, %s180
      %s181 = sphi 0, %s178
      %s182 = sphi 0, %s181
      %s198 = sphi 0, %s182
    $region4: #{tpu_custom_call.1} parent=1 // loop_header_branch
      %19 = sbr.rel (%p17) target = $region8
    $region5: #{tpu_custom_call.1} parent=1 // loop_body
      %s21 = ssub.s32 %s16, 1
      %s22 = ssub.s32 %s16, 2
      %s23 = sadd.s32 %s16, 1
      %s24 = ssub.s32 %s16, %s23
      %p25 = scmp.eq.s32.totalorder %s24, 0
      %s27 = sadd.s32 %s26, 1
      %s28 = scalar_select %p25, %s26, %s27
      %p31 = pneg %p25
      %p32 = scmp.eq.s32.totalorder %s16, 1
      %p33 = por %p31, %p32
      %p34 = scmp.ne.s32.totalorder %s26, %s29
      %p35 = scmp.eq.s32.totalorder %s16, 0
      %p36 = por %p34, %p35
      %p37 = scmp.ne.s32.totalorder %s26, %s29
      %p38 = scmp.eq.s32.totalorder %s21, 1
      %p39 = por %p37, %p38
      %p40 = scmp.ne.s32.totalorder %s29, %s30
      %p41 = scmp.eq.s32.totalorder %s21, 0
      %p42 = por %p40, %p41
      %p43 = scmp.ne.s32.totalorder %s29, %s30
      %p44 = scmp.eq.s32.totalorder %s22, 1
      %p45 = por %p43, %p44
      %p47 = scmp.ne.s32.totalorder %s30, %s46
      %p48 = scmp.eq.s32.totalorder %s22, 0
      %p49 = por %p47, %p48
      %s51 = sadd.s32 %s50, 1
      %p54 = scmp.eq.s32.totalorder %s16, 1
      %p55 = scmp.ne.s32.totalorder %s50, %s52
      %p56 = scmp.eq.s32.totalorder %s16, 0
      %p57 = por %p55, %p56
      %p58 = scmp.ne.s32.totalorder %s50, %s52
      %p59 = scmp.eq.s32.totalorder %s21, 1
      %p60 = por %p58, %p59
      %p61 = scmp.ne.s32.totalorder %s52, %s53
      %p62 = scmp.eq.s32.totalorder %s21, 0
      %p63 = por %p61, %p62
      %p64 = scmp.ne.s32.totalorder %s52, %s53
      %p65 = scmp.eq.s32.totalorder %s22, 1
      %p66 = por %p64, %p65
      %p68 = scmp.ne.s32.totalorder %s53, %s67
      %p69 = scmp.eq.s32.totalorder %s22, 0
      %p70 = por %p68, %p69
      %s72 = sadd.s32 %s71, 1
      %p75 = scmp.eq.s32.totalorder %s16, 1
      %p76 = scmp.ne.s32.totalorder %s71, %s73
      %p77 = scmp.eq.s32.totalorder %s16, 0
      %p78 = por %p76, %p77
      %p79 = scmp.ne.s32.totalorder %s71, %s73
      %p80 = scmp.eq.s32.totalorder %s21, 1
      %p81 = por %p79, %p80
      %p82 = scmp.ne.s32.totalorder %s73, %s74
      %p83 = scmp.eq.s32.totalorder %s21, 0
      %p84 = por %p82, %p83
      %p85 = scmp.ne.s32.totalorder %s73, %s74
      %p86 = scmp.eq.s32.totalorder %s22, 1
      %p87 = por %p85, %p86
      %p89 = scmp.ne.s32.totalorder %s74, %s88
      %p90 = scmp.eq.s32.totalorder %s22, 0
      %p91 = por %p89, %p90
      %s93 = sadd.s32 %s92, 1
      %p96 = scmp.eq.s32.totalorder %s16, 1
      %p97 = scmp.ne.s32.totalorder %s92, %s94
      %p98 = scmp.eq.s32.totalorder %s16, 0
      %p99 = por %p97, %p98
      %p100 = scmp.ne.s32.totalorder %s92, %s94
      %p101 = scmp.eq.s32.totalorder %s21, 1
      %p102 = por %p100, %p101
      %p103 = scmp.ne.s32.totalorder %s94, %s95
      %p104 = scmp.eq.s32.totalorder %s21, 0
      %p105 = por %p103, %p104
      %p106 = scmp.ne.s32.totalorder %s94, %s95
      %p107 = scmp.eq.s32.totalorder %s22, 1
      %p108 = por %p106, %p107
      %p110 = scmp.ne.s32.totalorder %s95, %s109
      %p111 = scmp.eq.s32.totalorder %s22, 0
      %p112 = por %p110, %p111
      %s114 = sadd.s32 %s113, 1
      %p117 = scmp.eq.s32.totalorder %s16, 1
      %p118 = scmp.ne.s32.totalorder %s113, %s115
      %p119 = scmp.eq.s32.totalorder %s16, 0
      %p120 = por %p118, %p119
      %p121 = scmp.ne.s32.totalorder %s113, %s115
      %p122 = scmp.eq.s32.totalorder %s21, 1
      %p123 = por %p121, %p122
      %p124 = scmp.ne.s32.totalorder %s115, %s116
      %p125 = scmp.eq.s32.totalorder %s21, 0
      %p126 = por %p124, %p125
      %p127 = scmp.ne.s32.totalorder %s115, %s116
      %p128 = scmp.eq.s32.totalorder %s22, 1
      %p129 = por %p127, %p128
      %p131 = scmp.ne.s32.totalorder %s116, %s130
      %p132 = scmp.eq.s32.totalorder %s22, 0
      %p133 = por %p131, %p132
      %s135 = sadd.s32 %s134, 1
      %p138 = scmp.eq.s32.totalorder %s16, 1
      %p139 = scmp.ne.s32.totalorder %s134, %s136
      %p140 = scmp.eq.s32.totalorder %s16, 0
      %p141 = por %p139, %p140
      %p142 = scmp.ne.s32.totalorder %s134, %s136
      %p143 = scmp.eq.s32.totalorder %s21, 1
      %p144 = por %p142, %p143
      %p145 = scmp.ne.s32.totalorder %s136, %s137
      %p146 = scmp.eq.s32.totalorder %s21, 0
      %p147 = por %p145, %p146
      %p148 = scmp.ne.s32.totalorder %s136, %s137
      %p149 = scmp.eq.s32.totalorder %s22, 1
      %p150 = por %p148, %p149
      %p152 = scmp.ne.s32.totalorder %s137, %s151
      %p153 = scmp.eq.s32.totalorder %s22, 0
      %p154 = por %p152, %p153
      %s156 = sadd.s32 %s155, 1
      %p159 = scmp.eq.s32.totalorder %s16, 1
      %p160 = scmp.ne.s32.totalorder %s155, %s157
      %p161 = scmp.eq.s32.totalorder %s16, 0
      %p162 = por %p160, %p161
      %p163 = scmp.ne.s32.totalorder %s155, %s157
      %p164 = scmp.eq.s32.totalorder %s21, 1
      %p165 = por %p163, %p164
      %p166 = scmp.ne.s32.totalorder %s157, %s158
      %p167 = scmp.eq.s32.totalorder %s21, 0
      %p168 = por %p166, %p167
      %p169 = scmp.ne.s32.totalorder %s157, %s158
      %p170 = scmp.eq.s32.totalorder %s22, 1
      %p171 = por %p169, %p170
      %p173 = scmp.ne.s32.totalorder %s158, %s172
      %p174 = scmp.eq.s32.totalorder %s22, 0
      %p175 = por %p173, %p174
      %s176 = ssub.s32 %s16, %s23
      %p177 = scmp.eq.s32.totalorder %s176, 0
      %s179 = sadd.s32 %s178, 1
      %s180 = scalar_select %p177, %s178, %s179
      %p183 = pneg %p177
      %p184 = scmp.eq.s32.totalorder %s16, 1
      %p185 = por %p183, %p184
      %p186 = scmp.ne.s32.totalorder %s178, %s181
      %p187 = scmp.eq.s32.totalorder %s16, 0
      %p188 = por %p186, %p187
      %p189 = scmp.ne.s32.totalorder %s178, %s181
      %p190 = scmp.eq.s32.totalorder %s21, 1
      %p191 = por %p189, %p190
      %p192 = scmp.ne.s32.totalorder %s181, %s182
      %p193 = scmp.eq.s32.totalorder %s21, 0
      %p194 = por %p192, %p193
      %p195 = scmp.ne.s32.totalorder %s181, %s182
      %p196 = scmp.eq.s32.totalorder %s22, 1
      %p197 = por %p195, %p196
      %p199 = scmp.ne.s32.totalorder %s182, %s198
      %p200 = scmp.eq.s32.totalorder %s22, 0
      %p201 = por %p199, %p200
      %p202 = scmp.le.s32.totalorder 1, %s16
      %p203 = scmp.lt.s32.totalorder %s16, 3
      %p204 = pnand %p202, %p203
      %p205 = pneg %p204
      // Predicated region
      $region9: #{tpu_custom_call.1} parent=5 // pred_check
        _
      $region10: #{tpu_custom_call.1} parent=5 // pred_check_branch
        %207 = sbr.rel (%p204) target = $region12
      $region11: #{tpu_custom_call.1} parent=5 // pred_region
        %s208 = ssub.s32 %s16, 1
        // Predicated region
        $region13: #{tpu_custom_call.1} parent=11 // pred_check
          %p209 = pneg %p63
        $region14: #{tpu_custom_call.1} parent=11 // pred_check_branch
          %211 = sbr.rel (%p209) target = $region16
        $region15: #{tpu_custom_call.1} parent=11 // pred_region
          _
        $region16: #{tpu_custom_call.1} parent=11 // pred_fallthru
          _
        // Predicated region
        $region17: #{tpu_custom_call.1} parent=11 // pred_check
          %p212 = pneg %p84
        $region18: #{tpu_custom_call.1} parent=11 // pred_check_branch
          %214 = sbr.rel (%p212) target = $region20
        $region19: #{tpu_custom_call.1} parent=11 // pred_region
          _
        $region20: #{tpu_custom_call.1} parent=11 // pred_fallthru
          _
        // Predicated region
        $region21: #{tpu_custom_call.1} parent=11 // pred_check
          %p215 = pneg %p105
        $region22: #{tpu_custom_call.1} parent=11 // pred_check_branch
          %217 = sbr.rel (%p215) target = $region24
        $region23: #{tpu_custom_call.1} parent=11 // pred_region
          _
        $region24: #{tpu_custom_call.1} parent=11 // pred_fallthru
          _
        // Predicated region
        $region25: #{tpu_custom_call.1} parent=11 // pred_check
          %p218 = pneg %p126
        $region26: #{tpu_custom_call.1} parent=11 // pred_check_branch
          %220 = sbr.rel (%p218) target = $region28
        $region27: #{tpu_custom_call.1} parent=11 // pred_region
          _
        $region28: #{tpu_custom_call.1} parent=11 // pred_fallthru
          _
        // Predicated region
        $region29: #{tpu_custom_call.1} parent=11 // pred_check
          %p221 = pneg %p147
        $region30: #{tpu_custom_call.1} parent=11 // pred_check_branch
          %223 = sbr.rel (%p221) target = $region32
        $region31: #{tpu_custom_call.1} parent=11 // pred_region
          _
        $region32: #{tpu_custom_call.1} parent=11 // pred_fallthru
          _
        // Predicated region
        $region33: #{tpu_custom_call.1} parent=11 // pred_check
          %p224 = pneg %p168
        $region34: #{tpu_custom_call.1} parent=11 // pred_check_branch
          %226 = sbr.rel (%p224) target = $region36
        $region35: #{tpu_custom_call.1} parent=11 // pred_region
          _
        $region36: #{tpu_custom_call.1} parent=11 // pred_fallthru
          _
      $region12: #{tpu_custom_call.1} parent=5 // pred_fallthru
        _
      %p227 = scmp.lt.s32.totalorder %s16, 2
      // Predicated region
      $region37: #{tpu_custom_call.1} parent=5 // pred_check
        %p228 = pneg %p227
      $region38: #{tpu_custom_call.1} parent=5 // pred_check_branch
        %230 = sbr.rel (%p228) target = $region40
      $region39: #{tpu_custom_call.1} parent=5 // pred_region
        // Predicated region
        $region41: #{tpu_custom_call.1} parent=39 // pred_check
          %p231 = pneg %p36
        $region42: #{tpu_custom_call.1} parent=39 // pred_check_branch
          %233 = sbr.rel (%p231) target = $region44
        $region43: #{tpu_custom_call.1} parent=39 // pred_region
          %p234 = scmp.lt.s32.totalorder %s16, 1
          %s235 = scalar_select %p234, %s16, 1
          %s236 = smul.addr %s235, 2
          %s237 = smul.addr %s236, 8
          %s238 = scalar_lea.vmem %s0, %s237
        $region44: #{tpu_custom_call.1} parent=39 // pred_fallthru
          _
      $region40: #{tpu_custom_call.1} parent=5 // pred_fallthru
        _
      %p239 = scmp.le.s32.totalorder 1, %s16
      %p240 = scmp.lt.s32.totalorder %s16, 3
      %p241 = pnand %p239, %p240
      %p242 = pneg %p241
      // Predicated region
      $region45: #{tpu_custom_call.1} parent=5 // pred_check
        _
      $region46: #{tpu_custom_call.1} parent=5 // pred_check_branch
        %244 = sbr.rel (%p241) target = $region48
      $region47: #{tpu_custom_call.1} parent=5 // pred_region
        %s245 = ssub.s32 %s16, 1
        %p246 = scmp.lt.s32.totalorder %s21, 1
        %s247 = scalar_select %p246, %s21, 1
        %s248 = smul.addr %s247, 2
        %s249 = smul.addr %s248, 8
        %s250 = scalar_lea.vmem %s0, %s249
        %p251 = pneg %p42
        %p252 = pneg %p39
        %p253 = pneg %p63
        %p254 = pneg %p60
        %p255 = pneg %p84
        %p256 = pneg %p81
        %p257 = pneg %p105
        %p258 = pneg %p102
        %p259 = pneg %p126
        %p260 = pneg %p123
        %p261 = pneg %p147
        %p262 = pneg %p144
        %p263 = pneg %p168
        %p264 = pneg %p165
        %p265 = pneg %p194
        %p266 = pneg %p191
        %s267 = sand.u32 %s181, 1
        %s268 = scalar_lea.sflag [#allocation3], %s267
        %s269 = sand.u32 %s181, 1
        %s270 = smul.addr %s269, 16
        %s271 = scalar_lea.vmem [#allocation2], %s270
        %p272 = scmp.lt.s32.totalorder %s21, 1
        %s273 = scalar_select %p272, %s21, 1
        %s274 = smul.addr %s273, 2
        %s275 = smul.addr %s274, 8
        %s276 = scalar_lea.vmem %s0, %s275
        %v278 = vld [vmem:[%s276] sm:$0xff]
        %v279 = vld [vmem:[%s276 + $0x8] sm:$0xff]
        %v280 = vld [vmem:[%s1] sm:$0x1]
        %v281 = vld [vmem:[%s2] sm:$0x1]
        %vm282 = vcmask 523264
        %v283 = vsel %vm282, %v278, 0.0
        %284 = vadd.xlane.f32.xlu0 %v283
        %v285 = vpop.xlane.xlu0 %284
        %v286 = vsel %vm282, %v279, 0.0
        %287 = vadd.xlane.f32.xlu0 %v286
        %v288 = vpop.xlane.xlu0 %287
        %v289 = vrcp.pop 64.0
        %v290 = vmul.f32 %v285, %v289
        %v291 = vmul.f32 %v288, %v289
        %v292 = vsub.f32 %v278, %v290
        %v293 = vsub.f32 %v279, %v291
        %v294 = vmul.f32 %v292, %v292
        %v295 = vmul.f32 %v293, %v293
        %v296 = vsel %vm282, %v294, 0.0
        %297 = vadd.xlane.f32.xlu0 %v296
        %v298 = vpop.xlane.xlu0 %297
        %v299 = vsel %vm282, %v295, 0.0
        %300 = vadd.xlane.f32.xlu0 %v299
        %v301 = vpop.xlane.xlu0 %300
        %v302 = vmul.f32 %v298, %v289
        %v303 = vmul.f32 %v301, %v289
        %v304 = vadd.f32 %v302, 1e-05
        %v305 = vadd.f32 %v303, 1e-05
        %v306 = vrsqrt.pop %v304
        %v307 = vrsqrt.pop %v305
        %v308 = vmul.f32 %v292, %v306
        %v309 = vmul.f32 %v293, %v307
        %v311 = vlaneseq
        %v312 = vshrl.u32 %v311, 7
        %v313 = vsub.s32 0, %v312
        %v314 = vrot.slane %v280, %v313
        %v316 = vmul.f32 %v308, %v314
        %v317 = vmul.f32 %v309, %v314
        %v319 = vlaneseq
        %v320 = vshrl.u32 %v319, 7
        %v321 = vsub.s32 0, %v320
        %v322 = vrot.slane %v281, %v321
        %v324 = vadd.f32 %v316, %v322
        %v325 = vadd.f32 %v317, %v322
        %v326 = vpack.c.bf16 %v325, %v324
        %v327 = vld [vmem:[%s3] sm:$0xf]
        %v328 = vld [vmem:[%s3 + $0x4] sm:$0xf]
        %v329 = vld [vmem:[%s3 + $0x8] sm:$0xf]
        %v330 = vld [vmem:[%s3 + $0xc] sm:$0xf]
        %v331 = vld [vmem:[%s3 + $0x10] sm:$0xf]
        %v332 = vld [vmem:[%s3 + $0x14] sm:$0xf]
        %v333 = vld [vmem:[%s3 + $0x18] sm:$0xf]
        %v334 = vld [vmem:[%s3 + $0x1c] sm:$0xf]
        %v335 = vld [vmem:[%s4] sm:$0x1]
        %v337 = vlaneseq
        %v338 = vshrl.u32 %v337, 7
        %v339 = vsub.s32 0, %v338
        %v340 = vrot.slane %v335, %v339
        %v350 = vunpack.c.l.b16 %v327
        %v351 = vunpack.c.l.b16 %v328
        %v352 = vunpack.c.l.b16 %v329
        %v353 = vunpack.c.l.b16 %v330
        %v354 = vunpack.c.l.b16 %v331
        %v355 = vunpack.c.l.b16 %v332
        %v356 = vunpack.c.l.b16 %v333
        %v357 = vunpack.c.l.b16 %v334
        %v358 = vpack.c.b16 %v351, %v350
        %v359 = vpack.c.b16 %v353, %v352
        %v360 = vpack.c.b16 %v355, %v354
        %v361 = vpack.c.b16 %v357, %v356
        %v367 = vsel %vm282, %v326, 0
        %369 = vmatprep.subr.bf16.mxu0 0
        %370 = vmatpush1.bf16.msra.mxu0 %v358
        %371 = vmatprep.subr.bf16.mxu0 0
        %372 = vmatpush1.bf16.msra.mxu0 %v359
        %373 = vmatprep.subr.bf16.mxu0 0
        %374 = vmatpush1.bf16.msra.mxu0 %v360
        %375 = vmatprep.subr.bf16.mxu0 0
        %376 = vmatpush1.bf16.msra.mxu0 %v361
        %377 = vmatprep.subr.bf16.mxu0 0
        %378 = vmatpush1.bf16.msra.mxu0 0
        %379 = vmatprep.subr.bf16.mxu0 0
        %380 = vmatpush1.bf16.msra.mxu0 0
        %381 = vmatprep.subr.bf16.mxu0 0
        %382 = vmatpush1.bf16.msra.mxu0 0
        %383 = vmatprep.subr.bf16.mxu0 0
        %384 = vmatpush1.bf16.msra.mxu0 0
        %385 = vmatprep.subr.bf16.mxu0 0
        %386 = vmatpush1.bf16.msra.mxu0 0
        %387 = vmatprep.subr.bf16.mxu0 0
        %388 = vmatpush1.bf16.msra.mxu0 0
        %389 = vmatprep.subr.bf16.mxu0 0
        %390 = vmatpush1.bf16.msra.mxu0 0
        %391 = vmatprep.subr.bf16.mxu0 0
        %392 = vmatpush1.bf16.msra.mxu0 0
        %393 = vmatprep.subr.bf16.mxu0 0
        %394 = vmatpush1.bf16.msra.mxu0 0
        %395 = vmatprep.subr.bf16.mxu0 0
        %396 = vmatpush1.bf16.msra.mxu0 0
        %397 = vmatprep.subr.bf16.mxu0 0
        %398 = vmatpush1.bf16.msra.mxu0 0
        %399 = vmatprep.subr.bf16.mxu0 0
        %400 = vmatpush1.bf16.msra.mxu0 0
        %401 = vmatprep.mubr.bf16.mxu0 0
        %402 = vmatmul.mubr.bf16.gmra.mrb[0].mxu0 %v367
        %v403 = vpop.f32.mrb[0].mxu0
        %v404 = vadd.f32 %v340, %v403
        %v405 = vpop.f32.mrb[0].mxu0
        %v406 = vpop.f32.mrb[0].mxu0
        %v407 = vadd.f32 %v340, %v406
        %v408 = vpop.f32.mrb[0].mxu0
        %409 = vdwg.mxu0
        %v410 = vld [vmem:[%s5] sm:$0x1]
        %v411 = vld [vmem:[%s6] sm:$0x1]
        %vm412 = vcmask 261120
        %v413 = vsel %vm412, %v404, 0.0
        %414 = vadd.xlane.f32.xlu0 %v413
        %v415 = vpop.xlane.xlu0 %414
        %v416 = vsel %vm412, %v407, 0.0
        %417 = vadd.xlane.f32.xlu0 %v416
        %v418 = vpop.xlane.xlu0 %417
        %v419 = vrcp.pop 32.0
        %v420 = vmul.f32 %v415, %v419
        %v421 = vmul.f32 %v418, %v419
        %v422 = vsub.f32 %v404, %v420
        %v423 = vsub.f32 %v407, %v421
        %v424 = vmul.f32 %v422, %v422
        %v425 = vmul.f32 %v423, %v423
        %v426 = vsel %vm412, %v424, 0.0
        %427 = vadd.xlane.f32.xlu0 %v426
        %v428 = vpop.xlane.xlu0 %427
        %v429 = vsel %vm412, %v425, 0.0
        %430 = vadd.xlane.f32.xlu0 %v429
        %v431 = vpop.xlane.xlu0 %430
        %v432 = vmul.f32 %v428, %v419
        %v433 = vmul.f32 %v431, %v419
        %v434 = vadd.f32 %v432, 1e-05
        %v435 = vadd.f32 %v433, 1e-05
        %v436 = vrsqrt.pop %v434
        %v437 = vrsqrt.pop %v435
        %v438 = vmul.f32 %v422, %v436
        %v439 = vmul.f32 %v423, %v437
        %v441 = vlaneseq
        %v442 = vshrl.u32 %v441, 7
        %v443 = vsub.s32 0, %v442
        %v444 = vrot.slane %v410, %v443
        %v446 = vmul.f32 %v438, %v444
        %v447 = vmul.f32 %v439, %v444
        %v449 = vlaneseq
        %v450 = vshrl.u32 %v449, 7
        %v451 = vsub.s32 0, %v450
        %v452 = vrot.slane %v411, %v451
        %v454 = vadd.f32 %v446, %v452
        %v455 = vadd.f32 %v447, %v452
        %456 = vst.msk [vmem:[%s271] sm:$0xff] %vm412, %v454
        %457 = vst.msk [vmem:[%s271 + $0x8] sm:$0xff] %vm412, %v455
        %s458 = sand.u32 %s181, 1
        %s459 = scalar_lea.sflag [#allocation3], %s458
        %s460 = sand.u32 %s181, 1
        %s461 = smul.addr %s460, 16
        %s462 = scalar_lea.vmem [#allocation2], %s461
        // Predicated region
        $region49: #{tpu_custom_call.1} parent=47 // pred_check
          %p463 = pneg %p191
        $region50: #{tpu_custom_call.1} parent=47 // pred_check_branch
          %465 = sbr.rel (%p463) target = $region52
        $region51: #{tpu_custom_call.1} parent=47 // pred_region
          %s467 = ssub.s32 256, 256
          %468 = vsyncadd %s459, %s467
          %s469 = smul.addr %s21, 2
          %s470 = smul.addr %s469, 128
          %s471 = scalar_lea.hbm %s7, %s470
          %s472 = sshll.u32 %s462, 4
          %s473 = int_to_ptr.vmem [resolvable:$true] %s472
          %478 = dma.vmem_to_hbm [thread:$0]  %s473, 256, %s471, %s459, 128, 128, 8
        $region52: #{tpu_custom_call.1} parent=47 // pred_fallthru
          _
      $region48: #{tpu_custom_call.1} parent=5 // pred_fallthru
        _
      %p479 = scmp.le.s32.totalorder 2, %s16
      // Predicated region
      $region53: #{tpu_custom_call.1} parent=5 // pred_check
        %p480 = pneg %p479
      $region54: #{tpu_custom_call.1} parent=5 // pred_check_branch
        %482 = sbr.rel (%p480) target = $region56
      $region55: #{tpu_custom_call.1} parent=5 // pred_region
        %s483 = ssub.s32 %s16, 2
        // Predicated region
        $region57: #{tpu_custom_call.1} parent=55 // pred_check
          %p484 = pneg %p197
        $region58: #{tpu_custom_call.1} parent=55 // pred_check_branch
          %486 = sbr.rel (%p484) target = $region60
        $region59: #{tpu_custom_call.1} parent=55 // pred_region
          %s487 = sand.u32 %s182, 1
          %s488 = scalar_lea.sflag [#allocation3], %s487
          %s489 = sand.u32 %s182, 1
          %s490 = smul.addr %s489, 16
          %s491 = scalar_lea.vmem [#allocation2], %s490
          %492 = dma.done %s488, 256
        $region60: #{tpu_custom_call.1} parent=55 // pred_fallthru
          _
      $region56: #{tpu_custom_call.1} parent=5 // pred_fallthru
        _
    $region6: #{tpu_custom_call.1} parent=1 // loop_footer
      %s20 = sadd.s32 1, %s16
    $region7: #{tpu_custom_call.1} parent=1 // loop_footer_branch
      %15 = sbr.rel target = $region3
    $region8: #{tpu_custom_call.1} parent=1 // loop_exit
      _
    %493 = vsyncpa [#allocation3], 1
    %s494 = scalar_lea.sflag [#allocation3], 1
    %495 = vsyncpa %s494, 1

</llo_original>
